<compile_context>
chip_gen: v7x
topology: tpu7x:2x2x1
jax: 0.10.0
libtpu: 0.0.40
codegen_flags: <defaults>
</compile_context>

<pallas_src>
import functools
import math

import jax
import jax.numpy as jnp
from jax.experimental import pallas as pl
from jax.experimental.pallas import tpu as pltpu


def _round_up(n, m):
    return -(-n // m) * m


def _lstm_policy_kernel(x_ref, wenc_ref, benc_ref,
                        hc0_ref, wgate_ref, bgate_ref,
                        wout_ref, bout_ref,
                        state_ref, head_ref, *, n_acts):
    f32, bf16 = jnp.float32, jnp.bfloat16
    H = hc0_ref.shape[-1] // 2
    A = n_acts

    # ---- encoder + relu (bf16 weights on the MXU, f32 accumulation) -------
    enc = jnp.dot(x_ref[...].astype(bf16), wenc_ref[...],
                  preferred_element_type=f32) + benc_ref[...]
    enc = jnp.maximum(enc, 0.0)

    # ---- fused LSTMCell gates: [enc | h0] @ [W_ih ; W_hh] + (b_ih + b_hh) --
    h0 = hc0_ref[:, :H]
    c0 = hc0_ref[:, H:]
    xh = jnp.concatenate([enc, h0], axis=-1).astype(bf16)
    gates = (jnp.dot(xh, wgate_ref[...], preferred_element_type=f32)
             + bgate_ref[...])
    i_g = jax.nn.sigmoid(gates[:, 0 * H:1 * H])   # torch gate order: i, f, g, o
    f_g = jax.nn.sigmoid(gates[:, 1 * H:2 * H])
    g_g = jnp.tanh(gates[:, 2 * H:3 * H])
    o_g = jax.nn.sigmoid(gates[:, 3 * H:4 * H])
    c = f_g * c0 + i_g * g_g
    h = o_g * jnp.tanh(c)
    state_ref[...] = jnp.concatenate([h, c], axis=-1)          # lane-dense [h | c]

    # ---- fused decoder + value head: one MXU pass (128-lane padded) --------
    hv = (jnp.dot(h.astype(bf16), wout_ref[...], preferred_element_type=f32)
          + bout_ref[...])
    logits = hv[:, :A]
    value = hv[:, A:A + 1]

    # ---- stable log-softmax + entropy (exp on the EUP; reuses logp) --------
    m = jnp.max(logits, axis=-1, keepdims=True)
    z = jnp.exp(logits - m)
    sz = jnp.sum(z, axis=-1, keepdims=True)
    logp = logits - (m + jnp.log(sz))
    p = jnp.exp(logp)                              # reuse logp instead of z / sz
    ent = -jnp.sum(logp * p, axis=-1, keepdims=True)

    # lane-dense head slab: [logits | logp | entropy | value | zero pad]
    pad = head_ref.shape[-1] - (2 * A + 2)
    head_ref[...] = jnp.concatenate(
        [logits, logp, ent, value, jnp.zeros((logits.shape[0], pad), f32)],
        axis=-1)


def lstm_policy_forward(kparams, x, state=None, act=None, with_entropy=None, key=None):
    """Mirrors LSTMPolicy.forward. Returns (act, logprob, entropy, value, (h, c))."""
    with_entropy = (act is not None) if with_entropy is None else with_entropy
    B = x.shape[0]
    H = kparams["n_hidden"]
    A = kparams["n_acts"]
    head_w = _round_up(2 * A + 2, 128)

    xf = x.reshape(B, -1).astype(jnp.float32)
    Bp = _round_up(max(B, 8), 8)                  # pad batch to a sublane multiple
    if state is None:
        hc0 = jnp.zeros((Bp, 2 * H), jnp.float32)
    else:
        h0, c0 = state
        hc0 = jnp.concatenate([h0, c0], axis=-1).astype(jnp.float32)
        if Bp != B:
            hc0 = jnp.pad(hc0, ((0, Bp - B), (0, 0)))
    if Bp != B:
        xf = jnp.pad(xf, ((0, Bp - B), (0, 0)))

    inputs = (xf, kparams["w_enc"], kparams["b_enc"], hc0,
              kparams["w_gate"], kparams["b_gate"],
              kparams["w_out"], kparams["b_out"])
    out_shapes = (
        jax.ShapeDtypeStruct((Bp, 2 * H), jnp.float32),    # [h | c]
        jax.ShapeDtypeStruct((Bp, head_w), jnp.float32),   # [logits|logp|ent|val|pad]
    )

    def spec(shape):
        nd = len(shape)
        return pl.BlockSpec(shape, lambda i, _nd=nd: (0,) * _nd)

    state_out, head = pl.pallas_call(
        functools.partial(_lstm_policy_kernel, n_acts=A),
        grid=(1,),
        in_specs=[spec(a.shape) for a in inputs],
        out_specs=tuple(spec(s.shape) for s in out_shapes),
        out_shape=out_shapes,
        compiler_params=pltpu.CompilerParams(dimension_semantics=("arbitrary",)),
    )(*inputs)
    # TODO(synk): for multi-step rollouts, lift the timestep loop into the kernel
    # (grid=(T,), constant index_map on the weights so they stay VMEM-resident,
    # h/c carried in VMEM scratch) to amortize launch + weight-DMA overhead; a
    # "parallel" batch grid axis would additionally engage v7x's second TC.

    h = state_out[:B, :H]
    c = state_out[:B, H:]
    logits = head[:B, 0:A]
    logp = head[:B, A:2 * A]
    ent = head[:B, 2 * A]
    val = head[:B, 2 * A + 1]

    if act is None:
        # torch.multinomial(softmax(logits), 1).byte().squeeze() equivalent.
        # Sampling is wrapper glue, not the hot path.  uint8 matches torch
        # .byte() (note: wraps if n_acts > 255); the gather index is int32.
        assert key is not None, "need a PRNG key to sample actions"
        act = jnp.squeeze(
            jax.random.categorical(key, logits, axis=-1).astype(jnp.uint8))
    act_idx = jnp.asarray(act).reshape(B).astype(jnp.int32)
    logprob = jnp.take_along_axis(logp, act_idx[:, None], axis=-1)[:, 0]
    entropy = ent if with_entropy else None
    return act, logprob, entropy, val, (h, c)


def init_params(key, obs_dim, n_hidden, n_acts):
    """Deterministic synthetic init matching the torch module's shapes/init scheme."""
    ks = jax.random.split(key, 5)

    def linear(k, fan_in, fan_out):
        bound = 1.0 / math.sqrt(fan_in)
        kw, kb = jax.random.split(k)
        w = jax.random.uniform(kw, (fan_in, fan_out), jnp.float32, -bound, bound)
        b = jax.random.uniform(kb, (1, fan_out), jnp.float32, -bound, bound)
        return w, b

    def orthogonal(k, rows, cols):      # rows >= cols here
        a = jax.random.normal(k, (rows, cols), jnp.float32)
        q, _ = jnp.linalg.qr(a)
        return q

    w_enc, b_enc = linear(ks[0], obs_dim, n_hidden)
    w_dec, b_dec = linear(ks[1], n_hidden, n_acts)
    w_val, b_val = linear(ks[2], n_hidden, 1)
    # LSTM: orthogonal weights, zero biases (as in the torch module's __init__)
    w_ih = orthogonal(ks[3], 4 * n_hidden, n_hidden).T   # (H, 4H) pre-transposed
    w_hh = orthogonal(ks[4], 4 * n_hidden, n_hidden).T
    b_ih = jnp.zeros((1, 4 * n_hidden), jnp.float32)
    b_hh = jnp.zeros((1, 4 * n_hidden), jnp.float32)
    return dict(w_enc=w_enc, b_enc=b_enc, w_dec=w_dec, b_dec=b_dec,
                w_val=w_val, b_val=b_val, w_ih=w_ih, b_ih=b_ih,
                w_hh=w_hh, b_hh=b_hh)


def pack_params(raw, n_acts):
    """Fuse / pad / cast raw params into the kernel-ready layout (done once)."""
    f32, bf16 = jnp.float32, jnp.bfloat16
    H = raw["w_hh"].shape[0]
    w_gate = jnp.concatenate([raw["w_ih"], raw["w_hh"]], axis=0).astype(bf16)  # (2H, 4H)
    b_gate = (raw["b_ih"] + raw["b_hh"]).astype(f32)                            # (1, 4H)
    out_w = _round_up(n_acts + 1, 128)          # lane-dense fused dec/val width
    w_out = jnp.concatenate([raw["w_dec"], raw["w_val"]], axis=1)               # (H, A+1)
    b_out = jnp.concatenate([raw["b_dec"], raw["b_val"]], axis=1)               # (1, A+1)
    w_out = jnp.pad(w_out, ((0, 0), (0, out_w - (n_acts + 1)))).astype(bf16)
    b_out = jnp.pad(b_out, ((0, 0), (0, out_w - (n_acts + 1)))).astype(f32)
    return dict(w_enc=raw["w_enc"].astype(bf16), b_enc=raw["b_enc"].astype(f32),
                w_gate=w_gate, b_gate=b_gate, w_out=w_out, b_out=b_out,
                n_hidden=H, n_acts=n_acts)


def _ref_forward(raw, x, h0, c0):
    """Pure-JAX reference using identically bf16-rounded matmul inputs."""
    f32, bf16 = jnp.float32, jnp.bfloat16

    def bdot(a, w):
        return jnp.dot(a.astype(bf16).astype(f32), w.astype(bf16).astype(f32),
                       preferred_element_type=f32)

    B = x.shape[0]
    xf = x.reshape(B, -1).astype(f32)
    enc = jnp.maximum(bdot(xf, raw["w_enc"]) + raw["b_enc"], 0.0)
    H = h0.shape[-1]
    gates = (bdot(enc, raw["w_ih"]) + raw["b_ih"]
             + bdot(h0, raw["w_hh"]) + raw["b_hh"])
    i = jax.nn.sigmoid(gates[:, :H])
    f = jax.nn.sigmoid(gates[:, H:2 * H])
    g = jnp.tanh(gates[:, 2 * H:3 * H])
    o = jax.nn.sigmoid(gates[:, 3 * H:])
    c = f * c0 + i * g
    h = o * jnp.tanh(c)
    value = (bdot(h, raw["w_val"]) + raw["b_val"])[:, 0]
    logits = bdot(h, raw["w_dec"]) + raw["b_dec"]
    logp = logits - jax.scipy.special.logsumexp(logits, axis=-1, keepdims=True)
    return h, c, value, logp


if __name__ == "__main__":
    B = 2                        # padded to 8 (sublane multiple) inside the wrapper
    obs_shape = (4, 4, 4)        # env.obs_shape -> flattened to 64
    n_hidden = 128               # torch module default; keeps gate slices lane-aligned
    n_acts = 6                   # env.n_acts

    key = jax.random.PRNGKey(0)
    kp, kx, ksample = jax.random.split(key, 3)
    raw = init_params(kp, math.prod(obs_shape), n_hidden, n_acts)
    kparams = pack_params(raw, n_acts)
    x = jax.random.normal(kx, (B,) + obs_shape, jnp.float32)

    # act=None path: samples the action, entropy is None (matches torch default)
    act, logprob, entropy, value, (h, c) = lstm_policy_forward(
        kparams, x, state=None, act=None, key=ksample)
    jax.block_until_ready((act, logprob, value, h, c))
    assert entropy is None

    # act provided path: entropy is computed
    act2, logprob2, entropy2, value2, (h2, c2) = lstm_policy_forward(
        kparams, x, state=(h, c), act=act)
    jax.block_until_ready((act2, logprob2, entropy2, value2, h2, c2))
    assert entropy2 is not None

    # correctness check against the pure-JAX reference (same bf16-rounded weights)
    h0 = jnp.zeros((B, n_hidden), jnp.float32)
    c0 = jnp.zeros((B, n_hidden), jnp.float32)
    h_ref, c_ref, v_ref, logp_ref = _ref_forward(raw, x, h0, c0)
    act_idx = jnp.asarray(act).reshape(B).astype(jnp.int32)
    lp_ref = jnp.take_along_axis(logp_ref, act_idx[:, None], axis=-1)[:, 0]
    assert jnp.allclose(h, h_ref, atol=5e-3), "h mismatch"
    assert jnp.allclose(c, c_ref, atol=5e-3), "c mismatch"
    assert jnp.allclose(value, v_ref, atol=5e-3), "value mismatch"
    assert jnp.allclose(logprob, lp_ref, atol=5e-3), "logprob mismatch"

    print("KERNEL_OK")
</pallas_src>

<mosaic_0001>
module attributes {stable_mosaic.version = 11 : i64} {
  func.func @_lstm_policy_kernel(%arg0: i32, %arg1: memref<8x64xf32, #tpu.memory_space<vmem>>, %arg2: memref<64x128xbf16, #tpu.memory_space<vmem>>, %arg3: memref<1x128xf32, #tpu.memory_space<vmem>>, %arg4: memref<8x256xf32, #tpu.memory_space<vmem>>, %arg5: memref<256x512xbf16, #tpu.memory_space<vmem>>, %arg6: memref<1x512xf32, #tpu.memory_space<vmem>>, %arg7: memref<128x128xbf16, #tpu.memory_space<vmem>>, %arg8: memref<1x128xf32, #tpu.memory_space<vmem>>, %arg9: memref<8x256xf32, #tpu.memory_space<vmem>>, %arg10: memref<8x128xf32, #tpu.memory_space<vmem>>) attributes {dimension_semantics = [#tpu.dimension_semantics<arbitrary>], iteration_bounds = array<i64: 1>, scalar_prefetch = 0 : i64, scratch_operands = 0 : i64, tpu.core_type = #tpu.core_type<tc>, window_params = [{pipeline_mode = #tpu.pipeline_mode<synchronous>, transform_indices = @transform_0, window_bounds = array<i64: 8, 64>}, {pipeline_mode = #tpu.pipeline_mode<synchronous>, transform_indices = @transform_1, window_bounds = array<i64: 64, 128>}, {pipeline_mode = #tpu.pipeline_mode<synchronous>, transform_indices = @transform_2, window_bounds = array<i64: 1, 128>}, {pipeline_mode = #tpu.pipeline_mode<synchronous>, transform_indices = @transform_3, window_bounds = array<i64: 8, 256>}, {pipeline_mode = #tpu.pipeline_mode<synchronous>, transform_indices = @transform_4, window_bounds = array<i64: 256, 512>}, {pipeline_mode = #tpu.pipeline_mode<synchronous>, transform_indices = @transform_5, window_bounds = array<i64: 1, 512>}, {pipeline_mode = #tpu.pipeline_mode<synchronous>, transform_indices = @transform_6, window_bounds = array<i64: 128, 128>}, {pipeline_mode = #tpu.pipeline_mode<synchronous>, transform_indices = @transform_7, window_bounds = array<i64: 1, 128>}, {pipeline_mode = #tpu.pipeline_mode<synchronous>, transform_indices = @transform_8, window_bounds = array<i64: 8, 256>}, {pipeline_mode = #tpu.pipeline_mode<synchronous>, transform_indices = @transform_9, window_bounds = array<i64: 8, 128>}]} {
    %c0 = arith.constant 0 : index
    %c0_0 = arith.constant 0 : index
    %0 = vector.load %arg1[%c0, %c0_0] : memref<8x64xf32, #tpu.memory_space<vmem>>, vector<8x64xf32>
    %1 = arith.truncf %0 : vector<8x64xf32> to vector<8x64xbf16>
    %c0_1 = arith.constant 0 : index
    %c0_2 = arith.constant 0 : index
    %2 = vector.load %arg2[%c0_1, %c0_2] : memref<64x128xbf16, #tpu.memory_space<vmem>>, vector<64x128xbf16>
    %cst = arith.constant dense<0.000000e+00> : vector<8x128xf32>
    %3 = tpu.matmul %1, %2, %cst {dimension_numbers = #tpu.dot_dimension_numbers<[1], [0], [0], [1], [0, 0, 1, 1], [], []>} : vector<8x64xbf16>, vector<64x128xbf16>, vector<8x128xf32> -> vector<8x128xf32>
    %c0_3 = arith.constant 0 : index
    %c0_4 = arith.constant 0 : index
    %4 = vector.load %arg3[%c0_3, %c0_4] : memref<1x128xf32, #tpu.memory_space<vmem>>, vector<1x128xf32>
    %5 = vector.broadcast %4 : vector<1x128xf32> to vector<8x128xf32>
    %6 = arith.addf %3, %5 : vector<8x128xf32>
    %cst_5 = arith.constant 0.000000e+00 : f32
    %7 = vector.broadcast %cst_5 : f32 to vector<8x128xf32>
    %8 = arith.maximumf %6, %7 : vector<8x128xf32>
    %c0_6 = arith.constant 0 : index
    %c0_7 = arith.constant 0 : index
    %9 = vector.load %arg4[%c0_6, %c0_7] : memref<8x256xf32, #tpu.memory_space<vmem>>, vector<8x128xf32>
    %c0_8 = arith.constant 0 : index
    %c128 = arith.constant 128 : index
    %10 = vector.load %arg4[%c0_8, %c128] : memref<8x256xf32, #tpu.memory_space<vmem>>, vector<8x128xf32>
    %11 = tpu.concatenate %8, %9 in 1 : vector<8x128xf32>, vector<8x128xf32> -> vector<8x256xf32>
    %12 = arith.truncf %11 : vector<8x256xf32> to vector<8x256xbf16>
    %c0_9 = arith.constant 0 : index
    %c0_10 = arith.constant 0 : index
    %13 = vector.load %arg5[%c0_9, %c0_10] : memref<256x512xbf16, #tpu.memory_space<vmem>>, vector<256x512xbf16>
    %cst_11 = arith.constant dense<0.000000e+00> : vector<8x512xf32>
    %14 = tpu.matmul %12, %13, %cst_11 {dimension_numbers = #tpu.dot_dimension_numbers<[1], [0], [0], [1], [0, 0, 1, 1], [], []>} : vector<8x256xbf16>, vector<256x512xbf16>, vector<8x512xf32> -> vector<8x512xf32>
    %c0_12 = arith.constant 0 : index
    %c0_13 = arith.constant 0 : index
    %15 = vector.load %arg6[%c0_12, %c0_13] : memref<1x512xf32, #tpu.memory_space<vmem>>, vector<1x512xf32>
    %16 = vector.broadcast %15 : vector<1x512xf32> to vector<8x512xf32>
    %17 = arith.addf %14, %16 : vector<8x512xf32>
    %18 = vector.extract_strided_slice %17 {offsets = [0, 0], sizes = [8, 128], strides = [1, 1]} : vector<8x512xf32> to vector<8x128xf32>
    %19 = arith.negf %18 : vector<8x128xf32>
    %20 = math.exp %19 : vector<8x128xf32>
    %cst_14 = arith.constant 1.000000e+00 : f32
    %21 = vector.broadcast %cst_14 : f32 to vector<8x128xf32>
    %22 = arith.addf %21, %20 : vector<8x128xf32>
    %23 = arith.divf %21, %22 : vector<8x128xf32>
    %24 = vector.extract_strided_slice %17 {offsets = [0, 128], sizes = [8, 128], strides = [1, 1]} : vector<8x512xf32> to vector<8x128xf32>
    %25 = arith.negf %24 : vector<8x128xf32>
    %26 = math.exp %25 : vector<8x128xf32>
    %cst_15 = arith.constant 1.000000e+00 : f32
    %27 = vector.broadcast %cst_15 : f32 to vector<8x128xf32>
    %28 = arith.addf %27, %26 : vector<8x128xf32>
    %29 = arith.divf %27, %28 : vector<8x128xf32>
    %30 = vector.extract_strided_slice %17 {offsets = [0, 256], sizes = [8, 128], strides = [1, 1]} : vector<8x512xf32> to vector<8x128xf32>
    %31 = math.tanh %30 : vector<8x128xf32>
    %32 = vector.extract_strided_slice %17 {offsets = [0, 384], sizes = [8, 128], strides = [1, 1]} : vector<8x512xf32> to vector<8x128xf32>
    %33 = arith.negf %32 : vector<8x128xf32>
    %34 = math.exp %33 : vector<8x128xf32>
    %cst_16 = arith.constant 1.000000e+00 : f32
    %35 = vector.broadcast %cst_16 : f32 to vector<8x128xf32>
    %36 = arith.addf %35, %34 : vector<8x128xf32>
    %37 = arith.divf %35, %36 : vector<8x128xf32>
    %38 = arith.mulf %29, %10 : vector<8x128xf32>
    %39 = arith.mulf %23, %31 : vector<8x128xf32>
    %40 = arith.addf %38, %39 : vector<8x128xf32>
    %41 = math.tanh %40 : vector<8x128xf32>
    %42 = arith.mulf %37, %41 : vector<8x128xf32>
    %43 = tpu.concatenate %42, %40 in 1 : vector<8x128xf32>, vector<8x128xf32> -> vector<8x256xf32>
    %c0_17 = arith.constant 0 : index
    %c0_18 = arith.constant 0 : index
    %44 = vector.load %arg9[%c0_17, %c0_18] : memref<8x256xf32, #tpu.memory_space<vmem>>, vector<8x256xf32>
    tpu.vector_store %arg9[%c0_17, %c0_18], %43 {strides = array<i32>} : memref<8x256xf32, #tpu.memory_space<vmem>>, vector<8x256xf32>,
    %45 = arith.truncf %42 : vector<8x128xf32> to vector<8x128xbf16>
    %c0_19 = arith.constant 0 : index
    %c0_20 = arith.constant 0 : index
    %46 = vector.load %arg7[%c0_19, %c0_20] : memref<128x128xbf16, #tpu.memory_space<vmem>>, vector<128x128xbf16>
    %cst_21 = arith.constant dense<0.000000e+00> : vector<8x128xf32>
    %47 = tpu.matmul %45, %46, %cst_21 {dimension_numbers = #tpu.dot_dimension_numbers<[1], [0], [0], [1], [0, 0, 1, 1], [], []>} : vector<8x128xbf16>, vector<128x128xbf16>, vector<8x128xf32> -> vector<8x128xf32>
    %c0_22 = arith.constant 0 : index
    %c0_23 = arith.constant 0 : index
    %48 = vector.load %arg8[%c0_22, %c0_23] : memref<1x128xf32, #tpu.memory_space<vmem>>, vector<1x128xf32>
    %49 = vector.broadcast %48 : vector<1x128xf32> to vector<8x128xf32>
    %50 = arith.addf %47, %49 : vector<8x128xf32>
    %51 = vector.extract_strided_slice %50 {offsets = [0, 0], sizes = [8, 6], strides = [1, 1]} : vector<8x128xf32> to vector<8x6xf32>
    %52 = vector.extract_strided_slice %50 {offsets = [0, 6], sizes = [8, 1], strides = [1, 1]} : vector<8x128xf32> to vector<8x1xf32>
    %cst_24 = arith.constant dense<0xFF800000> : vector<8xf32>
    %53 = vector.multi_reduction <maximumf>, %51, %cst_24 [1] : vector<8x6xf32> to vector<8xf32>
    %54 = vector.shape_cast %53 : vector<8xf32> to vector<8x1xf32>
    %55 = vector.broadcast %54 : vector<8x1xf32> to vector<8x6xf32>
    %56 = arith.subf %51, %55 : vector<8x6xf32>
    %57 = math.exp %56 : vector<8x6xf32>
    %cst_25 = arith.constant dense<0.000000e+00> : vector<8xf32>
    %58 = vector.multi_reduction <add>, %57, %cst_25 [1] : vector<8x6xf32> to vector<8xf32>
    %59 = vector.shape_cast %58 : vector<8xf32> to vector<8x1xf32>
    %60 = math.log %59 : vector<8x1xf32>
    %61 = arith.addf %54, %60 : vector<8x1xf32>
    %62 = vector.broadcast %61 : vector<8x1xf32> to vector<8x6xf32>
    %63 = arith.subf %51, %62 : vector<8x6xf32>
    %64 = math.exp %63 : vector<8x6xf32>
    %65 = arith.mulf %63, %64 : vector<8x6xf32>
    %cst_26 = arith.constant dense<0.000000e+00> : vector<8xf32>
    %66 = vector.multi_reduction <add>, %65, %cst_26 [1] : vector<8x6xf32> to vector<8xf32>
    %67 = vector.shape_cast %66 : vector<8xf32> to vector<8x1xf32>
    %cst_27 = arith.constant 0.000000e+00 : f32
    %68 = vector.broadcast %cst_27 : f32 to vector<8x1xf32>
    %69 = arith.subf %68, %67 : vector<8x1xf32>
    %cst_28 = arith.constant 0.000000e+00 : f32
    %70 = vector.broadcast %cst_28 : f32 to vector<8x114xf32>
    %71 = tpu.concatenate %51, %63, %69, %52, %70 in 1 : vector<8x6xf32>, vector<8x6xf32>, vector<8x1xf32>, vector<8x1xf32>, vector<8x114xf32> -> vector<8x128xf32>
    %c0_29 = arith.constant 0 : index
    %c0_30 = arith.constant 0 : index
    %72 = vector.load %arg10[%c0_29, %c0_30] : memref<8x128xf32, #tpu.memory_space<vmem>>, vector<8x128xf32>
    tpu.vector_store %arg10[%c0_29, %c0_30], %71 {strides = array<i32>} : memref<8x128xf32, #tpu.memory_space<vmem>>, vector<8x128xf32>,
    return
  }
  func.func @transform_0(%arg0: i32) -> (i32, i32) {
    %c0_i32 = arith.constant 0 : i32
    %c0_i32_0 = arith.constant 0 : i32
    %c0_i32_1 = arith.constant 0 : i32
    return %c0_i32, %c0_i32_0 : i32, i32
  }
  func.func @transform_1(%arg0: i32) -> (i32, i32) {
    %c0_i32 = arith.constant 0 : i32
    %c0_i32_0 = arith.constant 0 : i32
    %c0_i32_1 = arith.constant 0 : i32
    return %c0_i32, %c0_i32_0 : i32, i32
  }
  func.func @transform_2(%arg0: i32) -> (i32, i32) {
    %c0_i32 = arith.constant 0 : i32
    %c0_i32_0 = arith.constant 0 : i32
    %c0_i32_1 = arith.constant 0 : i32
    return %c0_i32, %c0_i32_0 : i32, i32
  }
  func.func @transform_3(%arg0: i32) -> (i32, i32) {
    %c0_i32 = arith.constant 0 : i32
    %c0_i32_0 = arith.constant 0 : i32
    %c0_i32_1 = arith.constant 0 : i32
    return %c0_i32, %c0_i32_0 : i32, i32
  }
  func.func @transform_4(%arg0: i32) -> (i32, i32) {
    %c0_i32 = arith.constant 0 : i32
    %c0_i32_0 = arith.constant 0 : i32
    %c0_i32_1 = arith.constant 0 : i32
    return %c0_i32, %c0_i32_0 : i32, i32
  }
  func.func @transform_5(%arg0: i32) -> (i32, i32) {
    %c0_i32 = arith.constant 0 : i32
    %c0_i32_0 = arith.constant 0 : i32
    %c0_i32_1 = arith.constant 0 : i32
    return %c0_i32, %c0_i32_0 : i32, i32
  }
  func.func @transform_6(%arg0: i32) -> (i32, i32) {
    %c0_i32 = arith.constant 0 : i32
    %c0_i32_0 = arith.constant 0 : i32
    %c0_i32_1 = arith.constant 0 : i32
    return %c0_i32, %c0_i32_0 : i32, i32
  }
  func.func @transform_7(%arg0: i32) -> (i32, i32) {
    %c0_i32 = arith.constant 0 : i32
    %c0_i32_0 = arith.constant 0 : i32
    %c0_i32_1 = arith.constant 0 : i32
    return %c0_i32, %c0_i32_0 : i32, i32
  }
  func.func @transform_8(%arg0: i32) -> (i32, i32) {
    %c0_i32 = arith.constant 0 : i32
    %c0_i32_0 = arith.constant 0 : i32
    %c0_i32_1 = arith.constant 0 : i32
    return %c0_i32, %c0_i32_0 : i32, i32
  }
  func.func @transform_9(%arg0: i32) -> (i32, i32) {
    %c0_i32 = arith.constant 0 : i32
    %c0_i32_0 = arith.constant 0 : i32
    %c0_i32_1 = arith.constant 0 : i32
    return %c0_i32, %c0_i32_0 : i32, i32
  }
}

</mosaic_0001>

<llo_original>
// kernel: tpu_custom_call.1
$region0: #{tpu_custom_call.1}
  #allocation0 [shape = 'u32[]', space=smem, size = 0x4, offset = 0x4, fixed_abs, tag = 'smem constant byte address 0x4 - core index']
  #allocation1 [shape = 'u32[144,128]{1,0:T(1,128)}', space=vmem, size = 0x12000, scoped, tag = 'internal scratch']
  %s0 = inlined_call_operand.hbm [shape: f32[8,64], index: 0, kind: input, shape index: {}]
  %s1 = inlined_call_operand.hbm [shape: bf16[64,128], index: 1, kind: input, shape index: {}]
  %s2 = inlined_call_operand.vmem [shape: f32[1,128], index: 2, kind: input, shape index: {}]
  %s3 = inlined_call_operand.hbm [shape: f32[8,256], index: 3, kind: input, shape index: {}]
  %s4 = inlined_call_operand.hbm [shape: bf16[256,512], index: 4, kind: input, shape index: {}]
  %s5 = inlined_call_operand.vmem [shape: f32[1,512], index: 5, kind: input, shape index: {}]
  %s6 = inlined_call_operand.hbm [shape: bf16[128,128], index: 6, kind: input, shape index: {}]
  %s7 = inlined_call_operand.vmem [shape: f32[1,128], index: 7, kind: input, shape index: {}]
  %s8 = inlined_call_operand.hbm [shape: f32[8,256], index: 8, kind: output, shape index: {0}]
  %s9 = inlined_call_operand.hbm [shape: f32[8,128], index: 9, kind: output, shape index: {1}]
  %10 = xla_tuple %s8, %s9
  %s11 = sld [smem:[#allocation0]]
  $region70: #{tpu_custom_call.1} parent=0
    _
  %s13 = ssub.s32 1, %s11
  %s14 = scalar_select 0, %s13, %s11
  $region1: #{tpu_custom_call.1} parent=0
    #allocation2 [shape = 'u8[4096]{0}', space=vmem, size = 0x1000, scoped, tag = 'input window, operand 0, single buffered']
    #allocation3 [shape = 's32[1]{0}', space=sflag, size = 0x4, scoped, tag = 'scoped memory for tpu_custom_call.1']
    #allocation4 [shape = 's32[1]{0}', space=sflag, size = 0x4, scoped, tag = 'scoped memory for tpu_custom_call.1']
    #allocation5 [shape = 'u8[16384]{0}', space=vmem, size = 0x4000, scoped, tag = 'input window, operand 1, single buffered']
    #allocation6 [shape = 's32[1]{0}', space=sflag, size = 0x4, scoped, tag = 'scoped memory for tpu_custom_call.1']
    #allocation7 [shape = 'u8[8192]{0}', space=vmem, size = 0x2000, scoped, tag = 'input window, operand 3, single buffered']
    #allocation8 [shape = 'u8[262144]{0}', space=vmem, size = 0x40000, scoped, tag = 'input window, operand 4, single buffered']
    #allocation9 [shape = 's32[1]{0}', space=sflag, size = 0x4, scoped, tag = 'scoped memory for tpu_custom_call.1']
    #allocation10 [shape = 'u8[32768]{0}', space=vmem, size = 0x8000, scoped, tag = 'input window, operand 6, single buffered']
    #allocation11 [shape = 'u8[8192]{0}', space=vmem, size = 0x2000, scoped, tag = 'output window, operand 0, single buffered']
    #allocation12 [shape = 'u8[4096]{0}', space=vmem, size = 0x1000, scoped, tag = 'output window, operand 1, single buffered']
    #allocation13 [shape = 's32[1]{0}', space=sflag, size = 0x4, scoped, tag = 'scoped memory for tpu_custom_call.1']
    %15 = vsyncpa [#allocation3], 0
    %16 = vsyncpa [#allocation6], 0
    %17 = vsyncpa [#allocation9], 0
    %18 = vsyncpa [#allocation4], 0
    %19 = vsyncpa [#allocation13], 0
    // Predicated region
    $region2: #{tpu_custom_call.1} parent=1 // pred_check
      _
    $region3: #{tpu_custom_call.1} parent=1 // pred_check_branch
      %21 = sbr.rel (0) target = $region5
    $region4: #{tpu_custom_call.1} parent=1 // pred_region
      %s23 = ssub.s32 128, 128
      %24 = vsyncadd [#allocation3], %s23
      %s26 = sshll.u32 [#allocation2], 4
      %s27 = int_to_ptr.vmem [resolvable:$true] %s26
      %29 = dma.hbm_to_vmem [thread:$0]  %s0, 128, %s27, [#allocation3]
    $region5: #{tpu_custom_call.1} parent=1 // pred_fallthru
      _
    // Predicated region
    $region6: #{tpu_custom_call.1} parent=1 // pred_check
      _
    $region7: #{tpu_custom_call.1} parent=1 // pred_check_branch
      %31 = sbr.rel (0) target = $region9
    $region8: #{tpu_custom_call.1} parent=1 // pred_region
      %s33 = ssub.s32 512, 512
      %34 = vsyncadd [#allocation6], %s33
      %s35 = sshll.u32 [#allocation5], 4
      %s36 = int_to_ptr.vmem [resolvable:$true] %s35
      %41 = dma.hbm_to_vmem [thread:$0]  %s1, 512, %s36, [#allocation6], 64, 64, 4
    $region9: #{tpu_custom_call.1} parent=1 // pred_fallthru
      _
    // Predicated region
    $region10: #{tpu_custom_call.1} parent=1 // pred_check
      _
    $region11: #{tpu_custom_call.1} parent=1 // pred_check_branch
      %43 = sbr.rel (0) target = $region13
    $region12: #{tpu_custom_call.1} parent=1 // pred_region
      _
    $region13: #{tpu_custom_call.1} parent=1 // pred_fallthru
      _
    // Predicated region
    $region14: #{tpu_custom_call.1} parent=1 // pred_check
      _
    $region15: #{tpu_custom_call.1} parent=1 // pred_check_branch
      %45 = sbr.rel (0) target = $region17
    $region16: #{tpu_custom_call.1} parent=1 // pred_region
      %s47 = ssub.s32 256, 256
      %48 = vsyncadd [#allocation6], %s47
      %s50 = sshll.u32 [#allocation7], 4
      %s51 = int_to_ptr.vmem [resolvable:$true] %s50
      %53 = dma.hbm_to_vmem [thread:$0]  %s3, 256, %s51, [#allocation6]
    $region17: #{tpu_custom_call.1} parent=1 // pred_fallthru
      _
    // Predicated region
    $region18: #{tpu_custom_call.1} parent=1 // pred_check
      _
    $region19: #{tpu_custom_call.1} parent=1 // pred_check_branch
      %55 = sbr.rel (0) target = $region21
    $region20: #{tpu_custom_call.1} parent=1 // pred_region
      %s57 = ssub.s32 8192, 8192
      %58 = vsyncadd [#allocation9], %s57
      %s59 = sshll.u32 [#allocation8], 4
      %s60 = int_to_ptr.vmem [resolvable:$true] %s59
      %65 = dma.hbm_to_vmem [thread:$0]  %s4, 8192, %s60, [#allocation9], 256, 256, 16
    $region21: #{tpu_custom_call.1} parent=1 // pred_fallthru
      _
    // Predicated region
    $region22: #{tpu_custom_call.1} parent=1 // pred_check
      _
    $region23: #{tpu_custom_call.1} parent=1 // pred_check_branch
      %67 = sbr.rel (0) target = $region25
    $region24: #{tpu_custom_call.1} parent=1 // pred_region
      _
    $region25: #{tpu_custom_call.1} parent=1 // pred_fallthru
      _
    // Predicated region
    $region26: #{tpu_custom_call.1} parent=1 // pred_check
      _
    $region27: #{tpu_custom_call.1} parent=1 // pred_check_branch
      %69 = sbr.rel (0) target = $region29
    $region28: #{tpu_custom_call.1} parent=1 // pred_region
      %s71 = ssub.s32 1024, 1024
      %72 = vsyncadd [#allocation9], %s71
      %s73 = sshll.u32 [#allocation10], 4
      %s74 = int_to_ptr.vmem [resolvable:$true] %s73
      %79 = dma.hbm_to_vmem [thread:$0]  %s6, 1024, %s74, [#allocation9], 64, 64, 4
    $region29: #{tpu_custom_call.1} parent=1 // pred_fallthru
      _
    // Predicated region
    $region30: #{tpu_custom_call.1} parent=1 // pred_check
      _
    $region31: #{tpu_custom_call.1} parent=1 // pred_check_branch
      %81 = sbr.rel (0) target = $region33
    $region32: #{tpu_custom_call.1} parent=1 // pred_region
      _
    $region33: #{tpu_custom_call.1} parent=1 // pred_fallthru
      _
    // Predicated region
    $region34: #{tpu_custom_call.1} parent=1 // pred_check
      _
    $region35: #{tpu_custom_call.1} parent=1 // pred_check_branch
      %83 = sbr.rel (0) target = $region37
    $region36: #{tpu_custom_call.1} parent=1 // pred_region
      %84 = dma.done [#allocation3], 128
    $region37: #{tpu_custom_call.1} parent=1 // pred_fallthru
      _
    // Predicated region
    $region38: #{tpu_custom_call.1} parent=1 // pred_check
      _
    $region39: #{tpu_custom_call.1} parent=1 // pred_check_branch
      %86 = sbr.rel (0) target = $region41
    $region40: #{tpu_custom_call.1} parent=1 // pred_region
      %87 = dma.done [#allocation6], 512
    $region41: #{tpu_custom_call.1} parent=1 // pred_fallthru
      _
    // Predicated region
    $region42: #{tpu_custom_call.1} parent=1 // pred_check
      _
    $region43: #{tpu_custom_call.1} parent=1 // pred_check_branch
      %89 = sbr.rel (0) target = $region45
    $region44: #{tpu_custom_call.1} parent=1 // pred_region
      %90 = dma.done [#allocation6], 256
    $region45: #{tpu_custom_call.1} parent=1 // pred_fallthru
      _
    // Predicated region
    $region46: #{tpu_custom_call.1} parent=1 // pred_check
      _
    $region47: #{tpu_custom_call.1} parent=1 // pred_check_branch
      %92 = sbr.rel (0) target = $region49
    $region48: #{tpu_custom_call.1} parent=1 // pred_region
      %93 = dma.done [#allocation9], 8192
    $region49: #{tpu_custom_call.1} parent=1 // pred_fallthru
      _
    // Predicated region
    $region50: #{tpu_custom_call.1} parent=1 // pred_check
      _
    $region51: #{tpu_custom_call.1} parent=1 // pred_check_branch
      %95 = sbr.rel (0) target = $region53
    $region52: #{tpu_custom_call.1} parent=1 // pred_region
      %96 = dma.done [#allocation9], 1024
    $region53: #{tpu_custom_call.1} parent=1 // pred_fallthru
      _
    %v98 = vld [vmem:[#allocation2] sm:$0xff]
    %v99 = vpack.c.bf16 %v98, %v98
    %v100 = vld [vmem:[#allocation5] sm:$0xf]
    %v101 = vld [vmem:[#allocation5 + $0x4] sm:$0xf]
    %v102 = vld [vmem:[#allocation5 + $0x8] sm:$0xf]
    %v103 = vld [vmem:[#allocation5 + $0xc] sm:$0xf]
    %v104 = vld [vmem:[#allocation5 + $0x10] sm:$0xf]
    %v105 = vld [vmem:[#allocation5 + $0x14] sm:$0xf]
    %v106 = vld [vmem:[#allocation5 + $0x18] sm:$0xf]
    %v107 = vld [vmem:[#allocation5 + $0x1c] sm:$0xf]
    %v108 = vld [vmem:[%s2] sm:$0x1]
    %v110 = vlaneseq
    %v111 = vshrl.u32 %v110, 7
    %v112 = vsub.s32 0, %v111
    %v113 = vrot.slane %v108, %v112
    %v123 = vunpack.c.l.b16 %v100
    %v124 = vunpack.c.l.b16 %v101
    %v125 = vunpack.c.l.b16 %v102
    %v126 = vunpack.c.l.b16 %v103
    %v127 = vunpack.c.l.b16 %v104
    %v128 = vunpack.c.l.b16 %v105
    %v129 = vunpack.c.l.b16 %v106
    %v130 = vunpack.c.l.b16 %v107
    %v131 = vpack.c.b16 %v124, %v123
    %v132 = vpack.c.b16 %v126, %v125
    %v133 = vpack.c.b16 %v128, %v127
    %v134 = vpack.c.b16 %v130, %v129
    %vm139 = vcmask 523264
    %v141 = vsel %vm139, %v99, 0
    %143 = vmatprep.subr.bf16.mxu0 0
    %144 = vmatpush1.bf16.msra.mxu0 %v131
    %145 = vmatprep.subr.bf16.mxu0 0
    %146 = vmatpush1.bf16.msra.mxu0 %v132
    %147 = vmatprep.subr.bf16.mxu0 0
    %148 = vmatpush1.bf16.msra.mxu0 %v133
    %149 = vmatprep.subr.bf16.mxu0 0
    %150 = vmatpush1.bf16.msra.mxu0 %v134
    %151 = vmatprep.subr.bf16.mxu0 0
    %152 = vmatpush1.bf16.msra.mxu0 0
    %153 = vmatprep.subr.bf16.mxu0 0
    %154 = vmatpush1.bf16.msra.mxu0 0
    %155 = vmatprep.subr.bf16.mxu0 0
    %156 = vmatpush1.bf16.msra.mxu0 0
    %157 = vmatprep.subr.bf16.mxu0 0
    %158 = vmatpush1.bf16.msra.mxu0 0
    %159 = vmatprep.subr.bf16.mxu0 0
    %160 = vmatpush1.bf16.msra.mxu0 0
    %161 = vmatprep.subr.bf16.mxu0 0
    %162 = vmatpush1.bf16.msra.mxu0 0
    %163 = vmatprep.subr.bf16.mxu0 0
    %164 = vmatpush1.bf16.msra.mxu0 0
    %165 = vmatprep.subr.bf16.mxu0 0
    %166 = vmatpush1.bf16.msra.mxu0 0
    %167 = vmatprep.subr.bf16.mxu0 0
    %168 = vmatpush1.bf16.msra.mxu0 0
    %169 = vmatprep.subr.bf16.mxu0 0
    %170 = vmatpush1.bf16.msra.mxu0 0
    %171 = vmatprep.subr.bf16.mxu0 0
    %172 = vmatpush1.bf16.msra.mxu0 0
    %173 = vmatprep.subr.bf16.mxu0 0
    %174 = vmatpush1.bf16.msra.mxu0 0
    %175 = vmatprep.mubr.bf16.mxu0 0
    %176 = vmatmul.mubr.bf16.gmra.mrb[0].mxu0 %v141
    %v177 = vpop.f32.mrb[0].mxu0
    %v178 = vadd.f32 %v113, %v177
    %v179 = vpop.f32.mrb[0].mxu0
    %v180 = vpop.f32.mrb[0].mxu0
    %v181 = vpop.f32.mrb[0].mxu0
    %182 = vdwg.mxu0
    %v183 = vmax.f32 %v178, 0.0
    %v184 = vld [vmem:[#allocation7] sm:$0xff]
    %v185 = vld [vmem:[#allocation7 + $0x8] sm:$0xff]
    %v186 = vpack.c.bf16 %v183, %v183
    %v187 = vpack.c.bf16 %v184, %v184
    %v188 = vld [vmem:[#allocation8] sm:$0xff]
    %v189 = vld [vmem:[#allocation8 + $0x8] sm:$0xff]
    %v190 = vld [vmem:[#allocation8 + $0x10] sm:$0xff]
    %v191 = vld [vmem:[#allocation8 + $0x18] sm:$0xff]
    %v192 = vld [vmem:[#allocation8 + $0x20] sm:$0xff]
    %v193 = vld [vmem:[#allocation8 + $0x28] sm:$0xff]
    %v194 = vld [vmem:[#allocation8 + $0x30] sm:$0xff]
    %v195 = vld [vmem:[#allocation8 + $0x38] sm:$0xff]
    %v196 = vld [vmem:[#allocation8 + $0x40] sm:$0xff]
    %v197 = vld [vmem:[#allocation8 + $0x48] sm:$0xff]
    %v198 = vld [vmem:[#allocation8 + $0x50] sm:$0xff]
    %v199 = vld [vmem:[#allocation8 + $0x58] sm:$0xff]
    %v200 = vld [vmem:[#allocation8 + $0x60] sm:$0xff]
    %v201 = vld [vmem:[#allocation8 + $0x68] sm:$0xff]
    %v202 = vld [vmem:[#allocation8 + $0x70] sm:$0xff]
    %v203 = vld [vmem:[#allocation8 + $0x78] sm:$0xff]
    %v204 = vld [vmem:[#allocation8 + $0x80] sm:$0xff]
    %v205 = vld [vmem:[#allocation8 + $0x88] sm:$0xff]
    %v206 = vld [vmem:[#allocation8 + $0x90] sm:$0xff]
    %v207 = vld [vmem:[#allocation8 + $0x98] sm:$0xff]
    %v208 = vld [vmem:[#allocation8 + $0xa0] sm:$0xff]
    %v209 = vld [vmem:[#allocation8 + $0xa8] sm:$0xff]
    %v210 = vld [vmem:[#allocation8 + $0xb0] sm:$0xff]
    %v211 = vld [vmem:[#allocation8 + $0xb8] sm:$0xff]
    %v212 = vld [vmem:[#allocation8 + $0xc0] sm:$0xff]
    %v213 = vld [vmem:[#allocation8 + $0xc8] sm:$0xff]
    %v214 = vld [vmem:[#allocation8 + $0xd0] sm:$0xff]
    %v215 = vld [vmem:[#allocation8 + $0xd8] sm:$0xff]
    %v216 = vld [vmem:[#allocation8 + $0xe0] sm:$0xff]
    %v217 = vld [vmem:[#allocation8 + $0xe8] sm:$0xff]
    %v218 = vld [vmem:[#allocation8 + $0xf0] sm:$0xff]
    %v219 = vld [vmem:[#allocation8 + $0xf8] sm:$0xff]
    %v220 = vld [vmem:[#allocation8 + $0x100] sm:$0xff]
    %v221 = vld [vmem:[#allocation8 + $0x108] sm:$0xff]
    %v222 = vld [vmem:[#allocation8 + $0x110] sm:$0xff]
    %v223 = vld [vmem:[#allocation8 + $0x118] sm:$0xff]
    %v224 = vld [vmem:[#allocation8 + $0x120] sm:$0xff]
    %v225 = vld [vmem:[#allocation8 + $0x128] sm:$0xff]
    %v226 = vld [vmem:[#allocation8 + $0x130] sm:$0xff]
    %v227 = vld [vmem:[#allocation8 + $0x138] sm:$0xff]
    %v228 = vld [vmem:[#allocation8 + $0x140] sm:$0xff]
    %v229 = vld [vmem:[#allocation8 + $0x148] sm:$0xff]
    %v230 = vld [vmem:[#allocation8 + $0x150] sm:$0xff]
    %v231 = vld [vmem:[#allocation8 + $0x158] sm:$0xff]
    %v232 = vld [vmem:[#allocation8 + $0x160] sm:$0xff]
    %v233 = vld [vmem:[#allocation8 + $0x168] sm:$0xff]
    %v234 = vld [vmem:[#allocation8 + $0x170] sm:$0xff]
    %v235 = vld [vmem:[#allocation8 + $0x178] sm:$0xff]
    %v236 = vld [vmem:[#allocation8 + $0x180] sm:$0xff]
    %v237 = vld [vmem:[#allocation8 + $0x188] sm:$0xff]
    %v238 = vld [vmem:[#allocation8 + $0x190] sm:$0xff]
    %v239 = vld [vmem:[#allocation8 + $0x198] sm:$0xff]
    %v240 = vld [vmem:[#allocation8 + $0x1a0] sm:$0xff]
    %v241 = vld [vmem:[#allocation8 + $0x1a8] sm:$0xff]
    %v242 = vld [vmem:[#allocation8 + $0x1b0] sm:$0xff]
    %v243 = vld [vmem:[#allocation8 + $0x1b8] sm:$0xff]
    %v244 = vld [vmem:[#allocation8 + $0x1c0] sm:$0xff]
    %v245 = vld [vmem:[#allocation8 + $0x1c8] sm:$0xff]
    %v246 = vld [vmem:[#allocation8 + $0x1d0] sm:$0xff]
    %v247 = vld [vmem:[#allocation8 + $0x1d8] sm:$0xff]
    %v248 = vld [vmem:[#allocation8 + $0x1e0] sm:$0xff]
    %v249 = vld [vmem:[#allocation8 + $0x1e8] sm:$0xff]
    %v250 = vld [vmem:[#allocation8 + $0x1f0] sm:$0xff]
    %v251 = vld [vmem:[#allocation8 + $0x1f8] sm:$0xff]
    %v252 = vld [vmem:[%s5] sm:$0xf]
    %v254 = vlaneseq
    %v255 = vshrl.u32 %v254, 7
    %v256 = vsub.s32 0, %v255
    %v257 = vrot.slane %v252, %v256
    %v258 = vlaneseq
    %v259 = vshrl.u32 %v258, 7
    %v260 = vsub.s32 1, %v259
    %v261 = vrot.slane %v252, %v260
    %v262 = vlaneseq
    %v263 = vshrl.u32 %v262, 7
    %v264 = vsub.s32 2, %v263
    %v265 = vrot.slane %v252, %v264
    %v266 = vlaneseq
    %v267 = vshrl.u32 %v266, 7
    %v268 = vsub.s32 3, %v267
    %v269 = vrot.slane %v252, %v268
    %v338 = vunpack.c.l.b16 %v188
    %v339 = vunpack.c.h.b16 %v188
    %v340 = vunpack.c.l.b16 %v189
    %v341 = vunpack.c.h.b16 %v189
    %v342 = vunpack.c.l.b16 %v190
    %v343 = vunpack.c.h.b16 %v190
    %v344 = vunpack.c.l.b16 %v191
    %v345 = vunpack.c.h.b16 %v191
    %v346 = vunpack.c.l.b16 %v192
    %v347 = vunpack.c.h.b16 %v192
    %v348 = vunpack.c.l.b16 %v193
    %v349 = vunpack.c.h.b16 %v193
    %v350 = vunpack.c.l.b16 %v194
    %v351 = vunpack.c.h.b16 %v194
    %v352 = vunpack.c.l.b16 %v195
    %v353 = vunpack.c.h.b16 %v195
    %v354 = vunpack.c.l.b16 %v196
    %v355 = vunpack.c.h.b16 %v196
    %v356 = vunpack.c.l.b16 %v197
    %v357 = vunpack.c.h.b16 %v197
    %v358 = vunpack.c.l.b16 %v198
    %v359 = vunpack.c.h.b16 %v198
    %v360 = vunpack.c.l.b16 %v199
    %v361 = vunpack.c.h.b16 %v199
    %v362 = vunpack.c.l.b16 %v200
    %v363 = vunpack.c.h.b16 %v200
    %v364 = vunpack.c.l.b16 %v201
    %v365 = vunpack.c.h.b16 %v201
    %v366 = vunpack.c.l.b16 %v202
    %v367 = vunpack.c.h.b16 %v202
    %v368 = vunpack.c.l.b16 %v203
    %v369 = vunpack.c.h.b16 %v203
    %v370 = vunpack.c.l.b16 %v204
    %v371 = vunpack.c.h.b16 %v204
    %v372 = vunpack.c.l.b16 %v205
    %v373 = vunpack.c.h.b16 %v205
    %v374 = vunpack.c.l.b16 %v206
    %v375 = vunpack.c.h.b16 %v206
    %v376 = vunpack.c.l.b16 %v207
    %v377 = vunpack.c.h.b16 %v207
    %v378 = vunpack.c.l.b16 %v208
    %v379 = vunpack.c.h.b16 %v208
    %v380 = vunpack.c.l.b16 %v209
    %v381 = vunpack.c.h.b16 %v209
    %v382 = vunpack.c.l.b16 %v210
    %v383 = vunpack.c.h.b16 %v210
    %v384 = vunpack.c.l.b16 %v211
    %v385 = vunpack.c.h.b16 %v211
    %v386 = vunpack.c.l.b16 %v212
    %v387 = vunpack.c.h.b16 %v212
    %v388 = vunpack.c.l.b16 %v213
    %v389 = vunpack.c.h.b16 %v213
    %v390 = vunpack.c.l.b16 %v214
    %v391 = vunpack.c.h.b16 %v214
    %v392 = vunpack.c.l.b16 %v215
    %v393 = vunpack.c.h.b16 %v215
    %v394 = vunpack.c.l.b16 %v216
    %v395 = vunpack.c.h.b16 %v216
    %v396 = vunpack.c.l.b16 %v217
    %v397 = vunpack.c.h.b16 %v217
    %v398 = vunpack.c.l.b16 %v218
    %v399 = vunpack.c.h.b16 %v218
    %v400 = vunpack.c.l.b16 %v219
    %v401 = vunpack.c.h.b16 %v219
    %v402 = vunpack.c.l.b16 %v220
    %v403 = vunpack.c.h.b16 %v220
    %v404 = vunpack.c.l.b16 %v221
    %v405 = vunpack.c.h.b16 %v221
    %v406 = vunpack.c.l.b16 %v222
    %v407 = vunpack.c.h.b16 %v222
    %v408 = vunpack.c.l.b16 %v223
    %v409 = vunpack.c.h.b16 %v223
    %v410 = vunpack.c.l.b16 %v224
    %v411 = vunpack.c.h.b16 %v224
    %v412 = vunpack.c.l.b16 %v225
    %v413 = vunpack.c.h.b16 %v225
    %v414 = vunpack.c.l.b16 %v226
    %v415 = vunpack.c.h.b16 %v226
    %v416 = vunpack.c.l.b16 %v227
    %v417 = vunpack.c.h.b16 %v227
    %v418 = vunpack.c.l.b16 %v228
    %v419 = vunpack.c.h.b16 %v228
    %v420 = vunpack.c.l.b16 %v229
    %v421 = vunpack.c.h.b16 %v229
    %v422 = vunpack.c.l.b16 %v230
    %v423 = vunpack.c.h.b16 %v230
    %v424 = vunpack.c.l.b16 %v231
    %v425 = vunpack.c.h.b16 %v231
    %v426 = vunpack.c.l.b16 %v232
    %v427 = vunpack.c.h.b16 %v232
    %v428 = vunpack.c.l.b16 %v233
    %v429 = vunpack.c.h.b16 %v233
    %v430 = vunpack.c.l.b16 %v234
    %v431 = vunpack.c.h.b16 %v234
    %v432 = vunpack.c.l.b16 %v235
    %v433 = vunpack.c.h.b16 %v235
    %v434 = vunpack.c.l.b16 %v236
    %v435 = vunpack.c.h.b16 %v236
    %v436 = vunpack.c.l.b16 %v237
    %v437 = vunpack.c.h.b16 %v237
    %v438 = vunpack.c.l.b16 %v238
    %v439 = vunpack.c.h.b16 %v238
    %v440 = vunpack.c.l.b16 %v239
    %v441 = vunpack.c.h.b16 %v239
    %v442 = vunpack.c.l.b16 %v240
    %v443 = vunpack.c.h.b16 %v240
    %v444 = vunpack.c.l.b16 %v241
    %v445 = vunpack.c.h.b16 %v241
    %v446 = vunpack.c.l.b16 %v242
    %v447 = vunpack.c.h.b16 %v242
    %v448 = vunpack.c.l.b16 %v243
    %v449 = vunpack.c.h.b16 %v243
    %v450 = vunpack.c.l.b16 %v244
    %v451 = vunpack.c.h.b16 %v244
    %v452 = vunpack.c.l.b16 %v245
    %v453 = vunpack.c.h.b16 %v245
    %v454 = vunpack.c.l.b16 %v246
    %v455 = vunpack.c.h.b16 %v246
    %v456 = vunpack.c.l.b16 %v247
    %v457 = vunpack.c.h.b16 %v247
    %v458 = vunpack.c.l.b16 %v248
    %v459 = vunpack.c.h.b16 %v248
    %v460 = vunpack.c.l.b16 %v249
    %v461 = vunpack.c.h.b16 %v249
    %v462 = vunpack.c.l.b16 %v250
    %v463 = vunpack.c.h.b16 %v250
    %v464 = vunpack.c.l.b16 %v251
    %v465 = vunpack.c.h.b16 %v251
    %v466 = vpack.c.b16 %v342, %v338
    %v467 = vpack.c.b16 %v343, %v339
    %v468 = vpack.c.b16 %v344, %v340
    %v469 = vpack.c.b16 %v345, %v341
    %v470 = vpack.c.b16 %v350, %v346
    %v471 = vpack.c.b16 %v351, %v347
    %v472 = vpack.c.b16 %v352, %v348
    %v473 = vpack.c.b16 %v353, %v349
    %v474 = vpack.c.b16 %v358, %v354
    %v475 = vpack.c.b16 %v359, %v355
    %v476 = vpack.c.b16 %v360, %v356
    %v477 = vpack.c.b16 %v361, %v357
    %v478 = vpack.c.b16 %v366, %v362
    %v479 = vpack.c.b16 %v367, %v363
    %v480 = vpack.c.b16 %v368, %v364
    %v481 = vpack.c.b16 %v369, %v365
    %v482 = vpack.c.b16 %v374, %v370
    %v483 = vpack.c.b16 %v375, %v371
    %v484 = vpack.c.b16 %v376, %v372
    %v485 = vpack.c.b16 %v377, %v373
    %v486 = vpack.c.b16 %v382, %v378
    %v487 = vpack.c.b16 %v383, %v379
    %v488 = vpack.c.b16 %v384, %v380
    %v489 = vpack.c.b16 %v385, %v381
    %v490 = vpack.c.b16 %v390, %v386
    %v491 = vpack.c.b16 %v391, %v387
    %v492 = vpack.c.b16 %v392, %v388
    %v493 = vpack.c.b16 %v393, %v389
    %v494 = vpack.c.b16 %v398, %v394
    %v495 = vpack.c.b16 %v399, %v395
    %v496 = vpack.c.b16 %v400, %v396
    %v497 = vpack.c.b16 %v401, %v397
    %v498 = vpack.c.b16 %v406, %v402
    %v499 = vpack.c.b16 %v407, %v403
    %v500 = vpack.c.b16 %v408, %v404
    %v501 = vpack.c.b16 %v409, %v405
    %v502 = vpack.c.b16 %v414, %v410
    %v503 = vpack.c.b16 %v415, %v411
    %v504 = vpack.c.b16 %v416, %v412
    %v505 = vpack.c.b16 %v417, %v413
    %v506 = vpack.c.b16 %v422, %v418
    %v507 = vpack.c.b16 %v423, %v419
    %v508 = vpack.c.b16 %v424, %v420
    %v509 = vpack.c.b16 %v425, %v421
    %v510 = vpack.c.b16 %v430, %v426
    %v511 = vpack.c.b16 %v431, %v427
    %v512 = vpack.c.b16 %v432, %v428
    %v513 = vpack.c.b16 %v433, %v429
    %v514 = vpack.c.b16 %v438, %v434
    %v515 = vpack.c.b16 %v439, %v435
    %v516 = vpack.c.b16 %v440, %v436
    %v517 = vpack.c.b16 %v441, %v437
    %v518 = vpack.c.b16 %v446, %v442
    %v519 = vpack.c.b16 %v447, %v443
    %v520 = vpack.c.b16 %v448, %v444
    %v521 = vpack.c.b16 %v449, %v445
    %v522 = vpack.c.b16 %v454, %v450
    %v523 = vpack.c.b16 %v455, %v451
    %v524 = vpack.c.b16 %v456, %v452
    %v525 = vpack.c.b16 %v457, %v453
    %v526 = vpack.c.b16 %v462, %v458
    %v527 = vpack.c.b16 %v463, %v459
    %v528 = vpack.c.b16 %v464, %v460
    %v529 = vpack.c.b16 %v465, %v461
    %594 = vmatprep.subr.bf16.mxu0 %v467
    %595 = vmatpush1.bf16.msra.mxu0 %v466
    %596 = vmatprep.subr.bf16.mxu0 %v471
    %597 = vmatpush1.bf16.msra.mxu0 %v470
    %598 = vmatprep.subr.bf16.mxu0 %v475
    %599 = vmatpush1.bf16.msra.mxu0 %v474
    %600 = vmatprep.subr.bf16.mxu0 %v479
    %601 = vmatpush1.bf16.msra.mxu0 %v478
    %602 = vmatprep.subr.bf16.mxu0 %v483
    %603 = vmatpush1.bf16.msra.mxu0 %v482
    %604 = vmatprep.subr.bf16.mxu0 %v487
    %605 = vmatpush1.bf16.msra.mxu0 %v486
    %606 = vmatprep.subr.bf16.mxu0 %v491
    %607 = vmatpush1.bf16.msra.mxu0 %v490
    %608 = vmatprep.subr.bf16.mxu0 %v495
    %609 = vmatpush1.bf16.msra.mxu0 %v494
    %610 = vmatprep.subr.bf16.mxu0 %v499
    %611 = vmatpush1.bf16.msra.mxu0 %v498
    %612 = vmatprep.subr.bf16.mxu0 %v503
    %613 = vmatpush1.bf16.msra.mxu0 %v502
    %614 = vmatprep.subr.bf16.mxu0 %v507
    %615 = vmatpush1.bf16.msra.mxu0 %v506
    %616 = vmatprep.subr.bf16.mxu0 %v511
    %617 = vmatpush1.bf16.msra.mxu0 %v510
    %618 = vmatprep.subr.bf16.mxu0 %v515
    %619 = vmatpush1.bf16.msra.mxu0 %v514
    %620 = vmatprep.subr.bf16.mxu0 %v519
    %621 = vmatpush1.bf16.msra.mxu0 %v518
    %622 = vmatprep.subr.bf16.mxu0 %v523
    %623 = vmatpush1.bf16.msra.mxu0 %v522
    %624 = vmatprep.subr.bf16.mxu0 %v527
    %625 = vmatpush1.bf16.msra.mxu0 %v526
    %626 = vmatprep.mubr.bf16.mxu0 %v187
    %627 = vmatmul.mubr.bf16.gmra.mrb[0].mxu0 %v186
    %v628 = vpop.f32.mrb[0].mxu0
    %v629 = vadd.f32 %v257, %v628
    %v630 = vpop.f32.mrb[0].mxu0
    %v631 = vadd.f32 %v261, %v630
    %v632 = vpop.f32.mrb[0].mxu0
    %v633 = vpop.f32.mrb[0].mxu0
    %634 = vdwg.mxu0
    %635 = vmatprep.subr.bf16.mxu0 %v469
    %636 = vmatpush1.bf16.msra.mxu0 %v468
    %637 = vmatprep.subr.bf16.mxu0 %v473
    %638 = vmatpush1.bf16.msra.mxu0 %v472
    %639 = vmatprep.subr.bf16.mxu0 %v477
    %640 = vmatpush1.bf16.msra.mxu0 %v476
    %641 = vmatprep.subr.bf16.mxu0 %v481
    %642 = vmatpush1.bf16.msra.mxu0 %v480
    %643 = vmatprep.subr.bf16.mxu0 %v485
    %644 = vmatpush1.bf16.msra.mxu0 %v484
    %645 = vmatprep.subr.bf16.mxu0 %v489
    %646 = vmatpush1.bf16.msra.mxu0 %v488
    %647 = vmatprep.subr.bf16.mxu0 %v493
    %648 = vmatpush1.bf16.msra.mxu0 %v492
    %649 = vmatprep.subr.bf16.mxu0 %v497
    %650 = vmatpush1.bf16.msra.mxu0 %v496
    %651 = vmatprep.subr.bf16.mxu0 %v501
    %652 = vmatpush1.bf16.msra.mxu0 %v500
    %653 = vmatprep.subr.bf16.mxu0 %v505
    %654 = vmatpush1.bf16.msra.mxu0 %v504
    %655 = vmatprep.subr.bf16.mxu0 %v509
    %656 = vmatpush1.bf16.msra.mxu0 %v508
    %657 = vmatprep.subr.bf16.mxu0 %v513
    %658 = vmatpush1.bf16.msra.mxu0 %v512
    %659 = vmatprep.subr.bf16.mxu0 %v517
    %660 = vmatpush1.bf16.msra.mxu0 %v516
    %661 = vmatprep.subr.bf16.mxu0 %v521
    %662 = vmatpush1.bf16.msra.mxu0 %v520
    %663 = vmatprep.subr.bf16.mxu0 %v525
    %664 = vmatpush1.bf16.msra.mxu0 %v524
    %665 = vmatprep.subr.bf16.mxu0 %v529
    %666 = vmatpush1.bf16.msra.mxu0 %v528
    %667 = vmatprep.mubr.bf16.mxu0 %v187
    %668 = vmatmul.mubr.bf16.gmra.mrb[0].mxu0 %v186
    %v669 = vpop.f32.mrb[0].mxu0
    %v670 = vadd.f32 %v265, %v669
    %v671 = vpop.f32.mrb[0].mxu0
    %v672 = vadd.f32 %v269, %v671
    %v673 = vpop.f32.mrb[0].mxu0
    %v674 = vpop.f32.mrb[0].mxu0
    %675 = vdwg.mxu0
    %v676 = vxor.u32 %v629, 2147483648
    %v677 = vmul.f32 %v676, 1.442695
    %v678 = vpow.pop %v677
    %v679 = vadd.f32 %v678, 1.0
    %v680 = vrcp.pop %v679
    %v681 = vmul.f32 1.0, %v680
    %v682 = vxor.u32 %v631, 2147483648
    %v683 = vmul.f32 %v682, 1.442695
    %v684 = vpow.pop %v683
    %v685 = vadd.f32 %v684, 1.0
    %v686 = vrcp.pop %v685
    %v687 = vmul.f32 1.0, %v686
    %v688 = vtanh.pop %v670
    %v689 = vxor.u32 %v672, 2147483648
    %v690 = vmul.f32 %v689, 1.442695
    %v691 = vpow.pop %v690
    %v692 = vadd.f32 %v691, 1.0
    %v693 = vrcp.pop %v692
    %v694 = vmul.f32 1.0, %v693
    %v695 = vmul.f32 %v687, %v185
    %v696 = vmul.f32 %v681, %v688
    %v697 = vadd.f32 %v695, %v696
    %v698 = vtanh.pop %v697
    %v699 = vmul.f32 %v694, %v698
    %700 = vst [vmem:[#allocation11] sm:$0xff] %v699
    %701 = vst [vmem:[#allocation11 + $0x8] sm:$0xff] %v697
    %v702 = vpack.c.bf16 %v699, %v699
    %v703 = vld [vmem:[#allocation10] sm:$0xf]
    %v704 = vld [vmem:[#allocation10 + $0x4] sm:$0xf]
    %v705 = vld [vmem:[#allocation10 + $0x8] sm:$0xf]
    %v706 = vld [vmem:[#allocation10 + $0xc] sm:$0xf]
    %v707 = vld [vmem:[#allocation10 + $0x10] sm:$0xf]
    %v708 = vld [vmem:[#allocation10 + $0x14] sm:$0xf]
    %v709 = vld [vmem:[#allocation10 + $0x18] sm:$0xf]
    %v710 = vld [vmem:[#allocation10 + $0x1c] sm:$0xf]
    %v711 = vld [vmem:[#allocation10 + $0x20] sm:$0xf]
    %v712 = vld [vmem:[#allocation10 + $0x24] sm:$0xf]
    %v713 = vld [vmem:[#allocation10 + $0x28] sm:$0xf]
    %v714 = vld [vmem:[#allocation10 + $0x2c] sm:$0xf]
    %v715 = vld [vmem:[#allocation10 + $0x30] sm:$0xf]
    %v716 = vld [vmem:[#allocation10 + $0x34] sm:$0xf]
    %v717 = vld [vmem:[#allocation10 + $0x38] sm:$0xf]
    %v718 = vld [vmem:[#allocation10 + $0x3c] sm:$0xf]
    %v719 = vld [vmem:[%s7] sm:$0x1]
    %v721 = vlaneseq
    %v722 = vshrl.u32 %v721, 7
    %v723 = vsub.s32 0, %v722
    %v724 = vrot.slane %v719, %v723
    %v742 = vunpack.c.l.b16 %v703
    %v743 = vunpack.c.l.b16 %v704
    %v744 = vunpack.c.l.b16 %v705
    %v745 = vunpack.c.l.b16 %v706
    %v746 = vunpack.c.l.b16 %v707
    %v747 = vunpack.c.l.b16 %v708
    %v748 = vunpack.c.l.b16 %v709
    %v749 = vunpack.c.l.b16 %v710
    %v750 = vunpack.c.l.b16 %v711
    %v751 = vunpack.c.l.b16 %v712
    %v752 = vunpack.c.l.b16 %v713
    %v753 = vunpack.c.l.b16 %v714
    %v754 = vunpack.c.l.b16 %v715
    %v755 = vunpack.c.l.b16 %v716
    %v756 = vunpack.c.l.b16 %v717
    %v757 = vunpack.c.l.b16 %v718
    %v758 = vpack.c.b16 %v743, %v742
    %v759 = vpack.c.b16 %v745, %v744
    %v760 = vpack.c.b16 %v747, %v746
    %v761 = vpack.c.b16 %v749, %v748
    %v762 = vpack.c.b16 %v751, %v750
    %v763 = vpack.c.b16 %v753, %v752
    %v764 = vpack.c.b16 %v755, %v754
    %v765 = vpack.c.b16 %v757, %v756
    %774 = vmatprep.subr.bf16.mxu0 0
    %775 = vmatpush1.bf16.msra.mxu0 %v758
    %776 = vmatprep.subr.bf16.mxu0 0
    %777 = vmatpush1.bf16.msra.mxu0 %v759
    %778 = vmatprep.subr.bf16.mxu0 0
    %779 = vmatpush1.bf16.msra.mxu0 %v760
    %780 = vmatprep.subr.bf16.mxu0 0
    %781 = vmatpush1.bf16.msra.mxu0 %v761
    %782 = vmatprep.subr.bf16.mxu0 0
    %783 = vmatpush1.bf16.msra.mxu0 %v762
    %784 = vmatprep.subr.bf16.mxu0 0
    %785 = vmatpush1.bf16.msra.mxu0 %v763
    %786 = vmatprep.subr.bf16.mxu0 0
    %787 = vmatpush1.bf16.msra.mxu0 %v764
    %788 = vmatprep.subr.bf16.mxu0 0
    %789 = vmatpush1.bf16.msra.mxu0 %v765
    %790 = vmatprep.subr.bf16.mxu0 0
    %791 = vmatpush1.bf16.msra.mxu0 0
    %792 = vmatprep.subr.bf16.mxu0 0
    %793 = vmatpush1.bf16.msra.mxu0 0
    %794 = vmatprep.subr.bf16.mxu0 0
    %795 = vmatpush1.bf16.msra.mxu0 0
    %796 = vmatprep.subr.bf16.mxu0 0
    %797 = vmatpush1.bf16.msra.mxu0 0
    %798 = vmatprep.subr.bf16.mxu0 0
    %799 = vmatpush1.bf16.msra.mxu0 0
    %800 = vmatprep.subr.bf16.mxu0 0
    %801 = vmatpush1.bf16.msra.mxu0 0
    %802 = vmatprep.subr.bf16.mxu0 0
    %803 = vmatpush1.bf16.msra.mxu0 0
    %804 = vmatprep.subr.bf16.mxu0 0
    %805 = vmatpush1.bf16.msra.mxu0 0
    %806 = vmatprep.mubr.bf16.mxu0 0
    %807 = vmatmul.mubr.bf16.gmra.mrb[0].mxu0 %v702
    %v808 = vpop.f32.mrb[0].mxu0
    %v809 = vadd.f32 %v724, %v808
    %v810 = vpop.f32.mrb[0].mxu0
    %v811 = vpop.f32.mrb[0].mxu0
    %v812 = vpop.f32.mrb[0].mxu0
    %813 = vdwg.mxu0
    %vm814 = vcmask 48128
    %v815 = vsel %vm814, %v809, -inf
    %816 = vmax.xlane.f32.xlu0 %v815
    %v817 = vpop.xlane.xlu0 %816
    %v818 = vsub.f32 %v809, %v817
    %v819 = vmul.f32 %v818, 1.442695
    %v820 = vpow.pop %v819
    %v821 = vsel %vm814, %v820, 0.0
    %822 = vadd.xlane.f32.xlu0 %v821
    %v823 = vpop.xlane.xlu0 %822
    %v824 = vlog2.pop %v823
    %v825 = vmul.f32 %v824, 0.6931472
    %v826 = vadd.f32 %v817, %v825
    %v827 = vsub.f32 %v809, %v826
    %v828 = vmul.f32 %v827, 1.442695
    %v829 = vpow.pop %v828
    %v830 = vmul.f32 %v827, %v829
    %v831 = vsel %vm814, %v830, 0.0
    %832 = vadd.xlane.f32.xlu0 %v831
    %v833 = vpop.xlane.xlu0 %832
    %v834 = vsub.f32 0.0, %v833
    %836 = vrot.lane.b32.xlu0 %v827, 6
    %v837 = vpop.permute.xlu0 %836
    %840 = vrot.lane.b32.xlu0 %v809, 7
    %v841 = vpop.permute.xlu0 %840
    %v843 = vsel %vm814, %v809, %v837
    %vm844 = vcmask 97280
    %v845 = vsel %vm844, %v843, %v834
    %vm846 = vcmask 105472
    %v847 = vsel %vm846, %v845, %v841
    %vm848 = vcmask 113664
    %v849 = vsel %vm848, %v847, 0.0
    %850 = vst [vmem:[#allocation12] sm:$0xff] %v849
    // Predicated region
    $region54: #{tpu_custom_call.1} parent=1 // pred_check
      _
    $region55: #{tpu_custom_call.1} parent=1 // pred_check_branch
      %852 = sbr.rel (0) target = $region57
    $region56: #{tpu_custom_call.1} parent=1 // pred_region
      %s854 = ssub.s32 256, 256
      %855 = vsyncadd [#allocation4], %s854
      %s857 = sshll.u32 [#allocation11], 4
      %s858 = int_to_ptr.vmem [resolvable:$true] %s857
      %860 = dma.vmem_to_hbm [thread:$0]  %s858, 256, %s8, [#allocation4]
    $region57: #{tpu_custom_call.1} parent=1 // pred_fallthru
      _
    // Predicated region
    $region58: #{tpu_custom_call.1} parent=1 // pred_check
      _
    $region59: #{tpu_custom_call.1} parent=1 // pred_check_branch
      %862 = sbr.rel (0) target = $region61
    $region60: #{tpu_custom_call.1} parent=1 // pred_region
      %s864 = ssub.s32 128, 128
      %865 = vsyncadd [#allocation13], %s864
      %s867 = sshll.u32 [#allocation12], 4
      %s868 = int_to_ptr.vmem [resolvable:$true] %s867
      %870 = dma.vmem_to_hbm [thread:$0]  %s868, 128, %s9, [#allocation13]
    $region61: #{tpu_custom_call.1} parent=1 // pred_fallthru
      _
    // Predicated region
    $region62: #{tpu_custom_call.1} parent=1 // pred_check
      _
    $region63: #{tpu_custom_call.1} parent=1 // pred_check_branch
      %872 = sbr.rel (0) target = $region65
    $region64: #{tpu_custom_call.1} parent=1 // pred_region
      %873 = dma.done [#allocation4], 256
    $region65: #{tpu_custom_call.1} parent=1 // pred_fallthru
      _
    // Predicated region
    $region66: #{tpu_custom_call.1} parent=1 // pred_check
      _
    $region67: #{tpu_custom_call.1} parent=1 // pred_check_branch
      %875 = sbr.rel (0) target = $region69
    $region68: #{tpu_custom_call.1} parent=1 // pred_region
      %876 = dma.done [#allocation13], 128
    $region69: #{tpu_custom_call.1} parent=1 // pred_fallthru
      _
    %877 = vsyncpa [#allocation3], 1
    %878 = vsyncpa [#allocation6], 1
    %879 = vsyncpa [#allocation9], 1
    %880 = vsyncpa [#allocation4], 1
    %881 = vsyncpa [#allocation13], 1

</llo_original>
